<compile_context>
chip_gen: v7x
topology: tpu7x:2x2x1
jax: 0.10.0
libtpu: 0.0.40
codegen_flags: <defaults>
</compile_context>

<pallas_src>
import jax
import jax.numpy as jnp
from jax import lax
from jax.experimental import pallas as pl
from jax.experimental.pallas import tpu as pltpu

LANES = 128
SUBLANES = 8
CHUNK = SUBLANES * LANES            # 1024-element alignment unit
# (4096, 128) f32 block = 2 MiB per input per step.  2 inputs x 2 pipeline
# buffers = 8 MiB, comfortably inside the 32 MiB scoped-VMEM limit set below
# on every TPU generation once compiler temporaries are accounted for.
TARGET_TILE_ROWS = 4096
VMEM_LIMIT_BYTES = 32 * 1024 * 1024
NUM_TENSORCORES = 2                 # v7x has 2 TCs; harmless on 1-TC chips.


def _round_up(a, b):
    return ((a + b - 1) // b) * b


def _make_kernel(tile_rows, steps_per_core, full_steps, tail_remaining,
                 total_grid_steps):
    """Streaming dice-reduction kernel body.

    All arguments are trace-time Python ints, so the partial-block threshold
    involves no in-kernel 32-bit multiplications (no overflow for huge n).
    """
    r_groups = tile_rows // SUBLANES
    has_masked_steps = full_steps < total_grid_steps

    def _accumulate(x_ref, t_ref, prod_ref, union_ref, remaining):
        x = x_ref[...].astype(jnp.float32)
        t = t_ref[...].astype(jnp.float32)
        # sigmoid(x) == 0.5 * (tanh(x/2) + 1): one EUP transcendental/element.
        s = 0.5 * (jnp.tanh(0.5 * x) + 1.0)
        if remaining is not None:
            row_ids = lax.broadcasted_iota(jnp.int32, (tile_rows, LANES), 0)
            lane_ids = lax.broadcasted_iota(jnp.int32, (tile_rows, LANES), 1)
            local_ids = row_ids * LANES + lane_ids
            valid = local_ids < remaining
            # NOTE: garbage rows of a partial block DO pass through tanh above.
            # That is safe: jnp.where is a select and never propagates values
            # (or NaNs) from the unselected branch.  Keep the mask AFTER the
            # transcendental; do not reorder.
            s = jnp.where(valid, s, 0.0)
            t = jnp.where(valid, t, 0.0)
        # Reduce the (tile_rows, 128) tiles to (8, 128) vector partials with
        # pure vreg+vreg adds (no cross-lane/sublane work in the hot loop).
        prod = (s * t).reshape(r_groups, SUBLANES, LANES).sum(axis=0)
        union = (s + t).reshape(r_groups, SUBLANES, LANES).sum(axis=0)
        prod_ref[0] += prod
        union_ref[0] += union

    def kernel(x_ref, t_ref, prod_ref, union_ref):
        c = pl.program_id(0)               # TensorCore shard
        i = pl.program_id(1)               # step within the shard
        g = c * steps_per_core + i         # global step id (small, int32-safe)

        @pl.when(i == 0)
        def _init():
            prod_ref[...] = jnp.zeros_like(prod_ref)
            union_ref[...] = jnp.zeros_like(union_ref)

        if has_masked_steps:
            # Bulk of the stream: no validity-mask work at all.
            @pl.when(g < full_steps)
            def _full():
                _accumulate(x_ref, t_ref, prod_ref, union_ref, None)

            # Only the single global step `full_steps` can hold a partial
            # block; later (phantom) steps of an uneven core split read a
            # clamped block and are fully masked out (remaining == 0).
            @pl.when(g >= full_steps)
            def _tail():
                remaining = jnp.where(g == full_steps,
                                      jnp.int32(tail_remaining), jnp.int32(0))
                _accumulate(x_ref, t_ref, prod_ref, union_ref, remaining)
        else:
            _accumulate(x_ref, t_ref, prod_ref, union_ref, None)

    return kernel


def _dice_sums_pallas(x2, t2, rows, tile_rows):
    """Returns (sum(sigmoid(x)*t), sum(sigmoid(x)) + sum(t)) over the slab."""
    n_valid = rows * LANES
    elems_per_step = tile_rows * LANES
    total_steps = pl.cdiv(rows, tile_rows)
    num_cores = NUM_TENSORCORES if total_steps >= NUM_TENSORCORES else 1
    steps_per_core = pl.cdiv(total_steps, num_cores)
    total_grid_steps = num_cores * steps_per_core
    full_steps = n_valid // elems_per_step
    tail_remaining = n_valid - full_steps * elems_per_step

    def in_map(c, i):
        # Clamp phantom steps of an uneven 2-core split onto the last real
        # block; the kernel zeroes their contribution.
        return (jnp.minimum(c * steps_per_core + i, total_steps - 1), 0)

    prod_p, union_p = pl.pallas_call(
        _make_kernel(tile_rows, steps_per_core, full_steps, tail_remaining,
                     total_grid_steps),
        out_shape=(
            jax.ShapeDtypeStruct((num_cores, SUBLANES, LANES), jnp.float32),
            jax.ShapeDtypeStruct((num_cores, SUBLANES, LANES), jnp.float32),
        ),
        grid_spec=pltpu.PrefetchScalarGridSpec(
            num_scalar_prefetch=0,
            grid=(num_cores, steps_per_core),
            in_specs=[
                pl.BlockSpec((tile_rows, LANES), in_map),
                pl.BlockSpec((tile_rows, LANES), in_map),
            ],
            # Same output block for every inner step -> VMEM-resident
            # accumulator; one block per core so the parallel split is safe.
            out_specs=(
                pl.BlockSpec((1, SUBLANES, LANES), lambda c, i: (c, 0, 0)),
                pl.BlockSpec((1, SUBLANES, LANES), lambda c, i: (c, 0, 0)),
            ),
        ),
        compiler_params=pltpu.CompilerParams(
            dimension_semantics=("parallel", "arbitrary"),
            vmem_limit_bytes=VMEM_LIMIT_BYTES,
        ),
    )(x2, t2)

    return jnp.sum(prod_p), jnp.sum(union_p)


def dice_loss(inputs, targets):
    """Pallas implementation of DiceLoss.forward; returns a scalar f32."""
    assert inputs.shape == targets.shape
    n = int(inputs.size)

    x_flat = inputs.reshape(-1)      # native dtype; cast happens in-kernel
    t_flat = targets.reshape(-1)

    # Stream the 1024-aligned prefix through the kernel (free reshape when n
    # is already a multiple of 1024); the < 1024-element ragged tail, if any,
    # is folded in with plain JAX.  No full-array jnp.pad copy.
    n_main = (n // CHUNK) * CHUNK

    inter = jnp.float32(0.0)
    union = jnp.float32(0.0)

    if n_main > 0:
        rows = n_main // LANES                     # multiple of 8
        tile_rows = min(TARGET_TILE_ROWS, _round_up(rows, SUBLANES))
        x2 = (x_flat if n_main == n else x_flat[:n_main]).reshape(rows, LANES)
        t2 = (t_flat if n_main == n else t_flat[:n_main]).reshape(rows, LANES)
        p, u = _dice_sums_pallas(x2, t2, rows, tile_rows)
        inter = inter + p
        union = union + u

    if n_main != n:
        # Tiny (< 1024 element) ragged tail handled with plain JAX.
        xt = x_flat[n_main:].astype(jnp.float32)
        tt = t_flat[n_main:].astype(jnp.float32)
        st = jax.nn.sigmoid(xt)
        inter = inter + jnp.sum(st * tt)
        union = union + jnp.sum(st) + jnp.sum(tt)

    dice_score = 2.0 * inter / (union + 1e-07)
    return 1.0 - dice_score


def _dice_loss_ref(inputs, targets):
    s = jax.nn.sigmoid(inputs.astype(jnp.float32))
    t = targets.astype(jnp.float32)
    inter = jnp.sum(s * t)
    union = jnp.sum(s) + jnp.sum(t)
    return 1.0 - 2.0 * inter / (union + 1e-07)


def _check(x, t, atol, rtol, name):
    loss = dice_loss(x, t)
    jax.block_until_ready(loss)
    ref = _dice_loss_ref(x, t)
    assert jnp.allclose(loss, ref, atol=atol, rtol=rtol), (name, loss, ref)


if __name__ == "__main__":
    key = jax.random.PRNGKey(0)
    k1, k2, k3, k4, k5, k6, k7, k8 = jax.random.split(key, 8)

    # 1) Small NCHW segmentation-head shapes (primary, spec-sized test).
    x = jax.random.normal(k1, (2, 4, 16, 16), dtype=jnp.float32)
    t = (jax.random.uniform(k2, (2, 4, 16, 16)) > 0.5).astype(jnp.float32)
    _check(x, t, 1e-5, 1e-5, "small")

    # 2) Ragged element count: 1024-aligned prefix through the kernel plus a
    #    plain-JAX tail.
    xr = jax.random.normal(k3, (3, 5, 100), dtype=jnp.float32)
    tr = (jax.random.uniform(k4, (3, 5, 100)) > 0.5).astype(jnp.float32)
    _check(xr, tr, 1e-5, 1e-5, "ragged")

    # 3) Tiny input below one 1024-element chunk (pure plain-JAX tail path).
    xs = jax.random.normal(k5, (3, 5, 7), dtype=jnp.float32)
    ts = (jax.random.uniform(k6, (3, 5, 7)) > 0.5).astype(jnp.float32)
    _check(xs, ts, 1e-5, 1e-5, "tiny")

    # 4) Larger input: exercises the 2-TensorCore parallel split, multi-step
    #    accumulation, the masked partial block and a phantom (clamped) step.
    xb = jax.random.normal(k7, (2, 4, 2050, 128), dtype=jnp.float32)
    tb = (jax.random.uniform(k8, (2, 4, 2050, 128)) > 0.5).astype(jnp.float32)
    _check(xb, tb, 1e-4, 1e-4, "large")

    print("KERNEL_OK")
</pallas_src>

<mosaic_0001>
module attributes {stable_mosaic.version = 11 : i64} {
  func.func @kernel(%arg0: i32, %arg1: i32, %arg2: memref<16x128xf32, #tpu.memory_space<vmem>>, %arg3: memref<16x128xf32, #tpu.memory_space<vmem>>, %arg4: memref<1x8x128xf32, #tpu.memory_space<vmem>>, %arg5: memref<1x8x128xf32, #tpu.memory_space<vmem>>) attributes {dimension_semantics = [#tpu.dimension_semantics<parallel>, #tpu.dimension_semantics<arbitrary>], iteration_bounds = array<i64: 1, 1>, scalar_prefetch = 0 : i64, scratch_operands = 0 : i64, tpu.core_type = #tpu.core_type<tc>, window_params = [{transform_indices = @transform_0, window_bounds = array<i64: 16, 128>}, {transform_indices = @transform_1, window_bounds = array<i64: 16, 128>}, {transform_indices = @transform_2, window_bounds = array<i64: 1, 8, 128>}, {transform_indices = @transform_3, window_bounds = array<i64: 1, 8, 128>}]} {
    %c0_i32 = arith.constant 0 : i32
    %0 = arith.cmpi eq, %arg1, %c0_i32 : i32
    %1 = arith.extui %0 : i1 to i32
    %c0_i32_0 = arith.constant 0 : i32
    %2 = arith.cmpi ne, %1, %c0_i32_0 : i32
    scf.if %2 {
      %cst_20 = arith.constant 0.000000e+00 : f32
      %30 = vector.broadcast %cst_20 : f32 to vector<1x8x128xf32>
      %c0_21 = arith.constant 0 : index
      %c0_22 = arith.constant 0 : index
      %c0_23 = arith.constant 0 : index
      %31 = vector.load %arg4[%c0_21, %c0_22, %c0_23] : memref<1x8x128xf32, #tpu.memory_space<vmem>>, vector<1x8x128xf32>
      tpu.vector_store %arg4[%c0_21, %c0_22, %c0_23], %30 {strides = array<i32>} : memref<1x8x128xf32, #tpu.memory_space<vmem>>, vector<1x8x128xf32>,
      %cst_24 = arith.constant 0.000000e+00 : f32
      %32 = vector.broadcast %cst_24 : f32 to vector<1x8x128xf32>
      %c0_25 = arith.constant 0 : index
      %c0_26 = arith.constant 0 : index
      %c0_27 = arith.constant 0 : index
      %33 = vector.load %arg5[%c0_25, %c0_26, %c0_27] : memref<1x8x128xf32, #tpu.memory_space<vmem>>, vector<1x8x128xf32>
      tpu.vector_store %arg5[%c0_25, %c0_26, %c0_27], %32 {strides = array<i32>} : memref<1x8x128xf32, #tpu.memory_space<vmem>>, vector<1x8x128xf32>,
    } else {
    }
    %c0 = arith.constant 0 : index
    %c0_1 = arith.constant 0 : index
    %3 = vector.load %arg2[%c0, %c0_1] : memref<16x128xf32, #tpu.memory_space<vmem>>, vector<16x128xf32>
    %c0_2 = arith.constant 0 : index
    %c0_3 = arith.constant 0 : index
    %4 = vector.load %arg3[%c0_2, %c0_3] : memref<16x128xf32, #tpu.memory_space<vmem>>, vector<16x128xf32>
    %cst = arith.constant 5.000000e-01 : f32
    %5 = vector.broadcast %cst : f32 to vector<16x128xf32>
    %6 = arith.mulf %5, %3 : vector<16x128xf32>
    %7 = math.tanh %6 : vector<16x128xf32>
    %cst_4 = arith.constant 1.000000e+00 : f32
    %8 = vector.broadcast %cst_4 : f32 to vector<16x128xf32>
    %9 = arith.addf %7, %8 : vector<16x128xf32>
    %cst_5 = arith.constant 5.000000e-01 : f32
    %10 = vector.broadcast %cst_5 : f32 to vector<16x128xf32>
    %11 = arith.mulf %10, %9 : vector<16x128xf32>
    %12 = arith.mulf %11, %4 : vector<16x128xf32>
    %13 = vector.shape_cast %12 : vector<16x128xf32> to vector<2x8x128xf32>
    %cst_6 = arith.constant dense<0.000000e+00> : vector<8x128xf32>
    %14 = vector.multi_reduction <add>, %13, %cst_6 [0] : vector<2x8x128xf32> to vector<8x128xf32>
    %15 = arith.addf %11, %4 : vector<16x128xf32>
    %16 = vector.shape_cast %15 : vector<16x128xf32> to vector<2x8x128xf32>
    %cst_7 = arith.constant dense<0.000000e+00> : vector<8x128xf32>
    %17 = vector.multi_reduction <add>, %16, %cst_7 [0] : vector<2x8x128xf32> to vector<8x128xf32>
    %c0_8 = arith.constant 0 : index
    %c0_9 = arith.constant 0 : index
    %c0_10 = arith.constant 0 : index
    %18 = vector.load %arg4[%c0_8, %c0_9, %c0_10] : memref<1x8x128xf32, #tpu.memory_space<vmem>>, vector<1x8x128xf32>
    %19 = vector.shape_cast %18 : vector<1x8x128xf32> to vector<8x128xf32>
    %20 = arith.addf %19, %14 : vector<8x128xf32>
    %c0_11 = arith.constant 0 : index
    %c0_12 = arith.constant 0 : index
    %c0_13 = arith.constant 0 : index
    %21 = vector.load %arg4[%c0_11, %c0_12, %c0_13] : memref<1x8x128xf32, #tpu.memory_space<vmem>>, vector<1x8x128xf32>
    %22 = vector.shape_cast %21 : vector<1x8x128xf32> to vector<8x128xf32>
    %23 = vector.shape_cast %20 : vector<8x128xf32> to vector<1x8x128xf32>
    tpu.vector_store %arg4[%c0_11, %c0_12, %c0_13], %23 {strides = array<i32>} : memref<1x8x128xf32, #tpu.memory_space<vmem>>, vector<1x8x128xf32>,
    %c0_14 = arith.constant 0 : index
    %c0_15 = arith.constant 0 : index
    %c0_16 = arith.constant 0 : index
    %24 = vector.load %arg5[%c0_14, %c0_15, %c0_16] : memref<1x8x128xf32, #tpu.memory_space<vmem>>, vector<1x8x128xf32>
    %25 = vector.shape_cast %24 : vector<1x8x128xf32> to vector<8x128xf32>
    %26 = arith.addf %25, %17 : vector<8x128xf32>
    %c0_17 = arith.constant 0 : index
    %c0_18 = arith.constant 0 : index
    %c0_19 = arith.constant 0 : index
    %27 = vector.load %arg5[%c0_17, %c0_18, %c0_19] : memref<1x8x128xf32, #tpu.memory_space<vmem>>, vector<1x8x128xf32>
    %28 = vector.shape_cast %27 : vector<1x8x128xf32> to vector<8x128xf32>
    %29 = vector.shape_cast %26 : vector<8x128xf32> to vector<1x8x128xf32>
    tpu.vector_store %arg5[%c0_17, %c0_18, %c0_19], %29 {strides = array<i32>} : memref<1x8x128xf32, #tpu.memory_space<vmem>>, vector<1x8x128xf32>,
    return
  }
  func.func @transform_0(%arg0: i32, %arg1: i32) -> (i32, i32) {
    %c1_i32 = arith.constant 1 : i32
    %0 = arith.muli %arg0, %c1_i32 : i32
    %1 = arith.addi %0, %arg1 : i32
    %c0_i32 = arith.constant 0 : i32
    %2 = arith.minsi %1, %c0_i32 : i32
    %c0_i32_0 = arith.constant 0 : i32
    %c0_i32_1 = arith.constant 0 : i32
    return %2, %c0_i32_0 : i32, i32
  }
  func.func @transform_1(%arg0: i32, %arg1: i32) -> (i32, i32) {
    %c1_i32 = arith.constant 1 : i32
    %0 = arith.muli %arg0, %c1_i32 : i32
    %1 = arith.addi %0, %arg1 : i32
    %c0_i32 = arith.constant 0 : i32
    %2 = arith.minsi %1, %c0_i32 : i32
    %c0_i32_0 = arith.constant 0 : i32
    %c0_i32_1 = arith.constant 0 : i32
    return %2, %c0_i32_0 : i32, i32
  }
  func.func @transform_2(%arg0: i32, %arg1: i32) -> (i32, i32, i32) {
    %c0_i32 = arith.constant 0 : i32
    %c0_i32_0 = arith.constant 0 : i32
    %c0_i32_1 = arith.constant 0 : i32
    return %arg0, %c0_i32, %c0_i32_0 : i32, i32, i32
  }
  func.func @transform_3(%arg0: i32, %arg1: i32) -> (i32, i32, i32) {
    %c0_i32 = arith.constant 0 : i32
    %c0_i32_0 = arith.constant 0 : i32
    %c0_i32_1 = arith.constant 0 : i32
    return %arg0, %c0_i32, %c0_i32_0 : i32, i32, i32
  }
}

</mosaic_0001>

<llo_original>
// kernel: tpu_custom_call.1
$region0: #{tpu_custom_call.1}
  #allocation0 [shape = 'u32[]', space=smem, size = 0x4, offset = 0x4, fixed_abs, tag = 'smem constant byte address 0x4 - core index']
  #allocation1 [shape = 'u32[144,128]{1,0:T(1,128)}', space=vmem, size = 0x12000, scoped, tag = 'internal scratch']
  %s0 = inlined_call_operand.hbm [shape: f32[16,128], index: 0, kind: input, shape index: {}]
  %s1 = inlined_call_operand.hbm [shape: f32[16,128], index: 1, kind: input, shape index: {}]
  %s2 = inlined_call_operand.hbm [shape: f32[1,8,128], index: 2, kind: output, shape index: {0}]
  %s3 = inlined_call_operand.hbm [shape: f32[1,8,128], index: 3, kind: output, shape index: {1}]
  %4 = xla_tuple %s2, %s3
  %s5 = sld [smem:[#allocation0]]
  $region38: #{tpu_custom_call.1} parent=0
    _
  %s7 = ssub.s32 1, %s5
  %s8 = scalar_select 0, %s7, %s5
  $region1: #{tpu_custom_call.1} parent=0
    #allocation2 [shape = 'u8[8192]{0}', space=vmem, size = 0x2000, scoped, tag = 'input window, operand 0, single buffered']
    #allocation3 [shape = 's32[1]{0}', space=sflag, size = 0x4, scoped, tag = 'scoped memory for tpu_custom_call.1']
    #allocation4 [shape = 's32[1]{0}', space=sflag, size = 0x4, scoped, tag = 'scoped memory for tpu_custom_call.1']
    #allocation5 [shape = 'u8[8192]{0}', space=vmem, size = 0x2000, scoped, tag = 'input window, operand 1, single buffered']
    #allocation6 [shape = 's32[1]{0}', space=sflag, size = 0x4, scoped, tag = 'scoped memory for tpu_custom_call.1']
    #allocation7 [shape = 'u8[4096]{0}', space=vmem, size = 0x1000, scoped, tag = 'output window, operand 0, single buffered']
    #allocation8 [shape = 'u8[4096]{0}', space=vmem, size = 0x1000, scoped, tag = 'output window, operand 1, single buffered']
    #allocation9 [shape = 's32[1]{0}', space=sflag, size = 0x4, scoped, tag = 'scoped memory for tpu_custom_call.1']
    %9 = vsyncpa [#allocation3], 0
    %10 = vsyncpa [#allocation6], 0
    %11 = vsyncpa [#allocation4], 0
    %12 = vsyncpa [#allocation9], 0
    // Predicated region
    $region2: #{tpu_custom_call.1} parent=1 // pred_check
      _
    $region3: #{tpu_custom_call.1} parent=1 // pred_check_branch
      %14 = sbr.rel (0) target = $region5
    $region4: #{tpu_custom_call.1} parent=1 // pred_region
      %s15 = sadd.s32 0, 0
      %p16 = scmp.lt.s32.totalorder %s15, 0
      %s17 = scalar_select %p16, %s15, 0
      %s18 = smul.u32 2, %s17
      %s20 = ssub.s32 256, 256
      %21 = vsyncadd [#allocation3], %s20
      %s22 = smul.addr %s18, 128
      %s23 = scalar_lea.hbm %s0, %s22
      %s24 = sshll.u32 [#allocation2], 4
      %s25 = int_to_ptr.vmem [resolvable:$true] %s24
      %30 = dma.hbm_to_vmem [thread:$0]  %s23, 256, %s25, [#allocation3], 128, 128, 8
    $region5: #{tpu_custom_call.1} parent=1 // pred_fallthru
      _
    // Predicated region
    $region6: #{tpu_custom_call.1} parent=1 // pred_check
      _
    $region7: #{tpu_custom_call.1} parent=1 // pred_check_branch
      %32 = sbr.rel (0) target = $region9
    $region8: #{tpu_custom_call.1} parent=1 // pred_region
      %s33 = sadd.s32 0, 0
      %p34 = scmp.lt.s32.totalorder %s33, 0
      %s35 = scalar_select %p34, %s33, 0
      %s36 = smul.u32 2, %s35
      %s38 = ssub.s32 256, 256
      %39 = vsyncadd [#allocation6], %s38
      %s40 = smul.addr %s36, 128
      %s41 = scalar_lea.hbm %s1, %s40
      %s42 = sshll.u32 [#allocation5], 4
      %s43 = int_to_ptr.vmem [resolvable:$true] %s42
      %48 = dma.hbm_to_vmem [thread:$0]  %s41, 256, %s43, [#allocation6], 128, 128, 8
    $region9: #{tpu_custom_call.1} parent=1 // pred_fallthru
      _
    // Predicated region
    $region10: #{tpu_custom_call.1} parent=1 // pred_check
      _
    $region11: #{tpu_custom_call.1} parent=1 // pred_check_branch
      %50 = sbr.rel (0) target = $region13
    $region12: #{tpu_custom_call.1} parent=1 // pred_region
      %51 = dma.done [#allocation3], 256
    $region13: #{tpu_custom_call.1} parent=1 // pred_fallthru
      _
    // Predicated region
    $region14: #{tpu_custom_call.1} parent=1 // pred_check
      _
    $region15: #{tpu_custom_call.1} parent=1 // pred_check_branch
      %53 = sbr.rel (0) target = $region17
    $region16: #{tpu_custom_call.1} parent=1 // pred_region
      %54 = dma.done [#allocation6], 256
    $region17: #{tpu_custom_call.1} parent=1 // pred_fallthru
      _
    %s55 = sadd.s32 0, 0
    %p56 = scmp.lt.s32.totalorder %s55, 0
    %s57 = scalar_select %p56, %s55, 0
    %s58 = smul.u32 2, %s57
    %s59 = sadd.s32 0, 0
    %p60 = scmp.lt.s32.totalorder %s59, 0
    %s61 = scalar_select %p60, %s59, 0
    %s62 = smul.u32 2, %s61
    %p63 = scmp.eq.s32.totalorder 0, 0
    // Predicated region
    $region18: #{tpu_custom_call.1} parent=1 // pred_check
      %p64 = pneg %p63
    $region19: #{tpu_custom_call.1} parent=1 // pred_check_branch
      %66 = sbr.rel (%p64) target = $region21
    $region20: #{tpu_custom_call.1} parent=1 // pred_region
      %67 = vst [vmem:[#allocation7] sm:$0xff] 0.0
      %68 = vst [vmem:[#allocation8] sm:$0xff] 0.0
    $region21: #{tpu_custom_call.1} parent=1 // pred_fallthru
      _
    %v69 = vld [vmem:[#allocation2] sm:$0xff]
    %v70 = vld [vmem:[#allocation2 + $0x8] sm:$0xff]
    %v71 = vld [vmem:[#allocation5] sm:$0xff]
    %v72 = vld [vmem:[#allocation5 + $0x8] sm:$0xff]
    %v73 = vmul.f32 %v69, 0.5
    %v74 = vmul.f32 %v70, 0.5
    %v75 = vtanh.pop %v73
    %v76 = vtanh.pop %v74
    %v77 = vadd.f32 %v75, 1.0
    %v78 = vadd.f32 %v76, 1.0
    %v79 = vmul.f32 %v77, 0.5
    %v80 = vmul.f32 %v78, 0.5
    %v81 = vmul.f32 %v79, %v71
    %v82 = vmul.f32 %v80, %v72
    %v83 = vadd.f32 %v81, %v82
    %v84 = vadd.f32 %v79, %v71
    %v85 = vadd.f32 %v80, %v72
    %v86 = vadd.f32 %v84, %v85
    %v87 = vld [vmem:[#allocation7] sm:$0xff]
    %v88 = vadd.f32 %v87, %v83
    %89 = vst [vmem:[#allocation7] sm:$0xff] %v88
    %v90 = vld [vmem:[#allocation8] sm:$0xff]
    %v91 = vadd.f32 %v90, %v86
    %92 = vst [vmem:[#allocation8] sm:$0xff] %v91
    // Predicated region
    $region22: #{tpu_custom_call.1} parent=1 // pred_check
      _
    $region23: #{tpu_custom_call.1} parent=1 // pred_check_branch
      %94 = sbr.rel (0) target = $region25
    $region24: #{tpu_custom_call.1} parent=1 // pred_region
      %s96 = ssub.s32 128, 128
      %97 = vsyncadd [#allocation4], %s96
      %s99 = sshll.u32 [#allocation7], 4
      %s100 = int_to_ptr.vmem [resolvable:$true] %s99
      %102 = dma.vmem_to_hbm [thread:$0]  %s100, 128, %s2, [#allocation4]
    $region25: #{tpu_custom_call.1} parent=1 // pred_fallthru
      _
    // Predicated region
    $region26: #{tpu_custom_call.1} parent=1 // pred_check
      _
    $region27: #{tpu_custom_call.1} parent=1 // pred_check_branch
      %104 = sbr.rel (0) target = $region29
    $region28: #{tpu_custom_call.1} parent=1 // pred_region
      %s106 = ssub.s32 128, 128
      %107 = vsyncadd [#allocation9], %s106
      %s109 = sshll.u32 [#allocation8], 4
      %s110 = int_to_ptr.vmem [resolvable:$true] %s109
      %112 = dma.vmem_to_hbm [thread:$0]  %s110, 128, %s3, [#allocation9]
    $region29: #{tpu_custom_call.1} parent=1 // pred_fallthru
      _
    // Predicated region
    $region30: #{tpu_custom_call.1} parent=1 // pred_check
      _
    $region31: #{tpu_custom_call.1} parent=1 // pred_check_branch
      %114 = sbr.rel (0) target = $region33
    $region32: #{tpu_custom_call.1} parent=1 // pred_region
      %115 = dma.done [#allocation4], 128
    $region33: #{tpu_custom_call.1} parent=1 // pred_fallthru
      _
    // Predicated region
    $region34: #{tpu_custom_call.1} parent=1 // pred_check
      _
    $region35: #{tpu_custom_call.1} parent=1 // pred_check_branch
      %117 = sbr.rel (0) target = $region37
    $region36: #{tpu_custom_call.1} parent=1 // pred_region
      %118 = dma.done [#allocation9], 128
    $region37: #{tpu_custom_call.1} parent=1 // pred_fallthru
      _
    %119 = vsyncpa [#allocation3], 1
    %120 = vsyncpa [#allocation6], 1
    %121 = vsyncpa [#allocation4], 1
    %122 = vsyncpa [#allocation9], 1

</llo_original>
